<compile_context>
chip_gen: v7x
topology: tpu7x:2x2x1
jax: 0.10.0
libtpu: 0.0.40
codegen_flags: <defaults>
</compile_context>

<pallas_src>
import functools

import jax
import jax.numpy as jnp
from jax import lax
from jax.experimental import pallas as pl
from jax.experimental.pallas import tpu as pltpu

LANE = 128
SUB = 8                          # f32 sublanes per vreg; fold target
CHUNK_ROWS = 128                 # rows per fused entropy+fold chunk (64 KiB f32)
DEFAULT_MAX_BLOCK_ROWS = 16384   # 16384 * 128 * 4 B = 8 MiB f32 per streamed block


def _round_up(x, m):
    return ((x + m - 1) // m) * m


def _cdiv(x, m):
    return (x + m - 1) // m


def _entropy_kernel(op_ref, out_ref, *, n_valid, block_rows, chunk_rows,
                    t_per_split, total_blocks, needs_mask):
    """Accumulate (8, 128) partial sums of binary entropy into out_ref."""
    s = pl.program_id(1)
    t = pl.program_id(2)

    @pl.when(t == 0)
    def _():
        out_ref[...] = jnp.zeros_like(out_ref)

    # Global row-block index of this grid step within its render.
    block_idx = s * t_per_split + t

    def chunk_partial(row_off, nrows, masked):
        # Entropy of rows [row_off, row_off + nrows) of this block, folded to an
        # (8, 128) partial with cheap cross-vreg VPU adds (layout-preserving
        # reshape).  Cast to f32 happens here, in VMEM, not in the wrapper.
        o = op_ref[pl.ds(row_off, nrows), :].astype(jnp.float32) + 1e-10
        ent = -o * jnp.log(o) - (1.0 - o) * jnp.log(1.0 - o)
        if masked:
            row = lax.broadcasted_iota(jnp.int32, (nrows, LANE), 0)
            lane = lax.broadcasted_iota(jnp.int32, (nrows, LANE), 1)
            flat = (block_idx * block_rows + row_off + row) * LANE + lane
            ent = jnp.where(flat < n_valid, ent, 0.0)
        return jnp.sum(ent.reshape(nrows // SUB, SUB, LANE), axis=0)

    n_full = block_rows // chunk_rows
    tail = block_rows - n_full * chunk_rows

    def block_sum(masked):
        acc = jnp.zeros((SUB, LANE), jnp.float32)
        if n_full > 0:
            def body(i, a):
                off = pl.multiple_of(i * chunk_rows, chunk_rows)
                return a + chunk_partial(off, chunk_rows, masked)
            acc = lax.fori_loop(0, n_full, body, acc, unroll=min(4, n_full))
        if tail > 0:
            acc = acc + chunk_partial(n_full * chunk_rows, tail, masked)
        return acc

    if not needs_mask:
        out_ref[...] += block_sum(False)
    elif total_blocks == 1:
        out_ref[...] += block_sum(True)
    else:
        is_last = block_idx == total_blocks - 1

        @pl.when(jnp.logical_not(is_last))
        def _():
            out_ref[...] += block_sum(False)

        @pl.when(is_last)
        def _():
            out_ref[...] += block_sum(True)


def gs_opacity_loss(opacities, weight=0.001,
                    max_block_rows=DEFAULT_MAX_BLOCK_ROWS,
                    chunk_rows=CHUNK_ROWS):
    """opacities: (R, N) floats in (0, 1). Returns dict with the scalar loss."""
    R, N = opacities.shape
    assert N < 2 ** 31, "int32 flat-index mask would overflow"

    itemsize = jnp.dtype(opacities.dtype).itemsize
    gran = {4: 8, 2: 16, 1: 32}.get(itemsize, 8)   # sublane packing granularity

    rows = _cdiv(N, LANE)

    # Right-size the row-block: split the sweep evenly, never round the total
    # extent up to a multiple of max_block_rows.
    nblocks = _cdiv(rows, max_block_rows)
    block_rows = _round_up(_cdiv(rows, nblocks), gran)
    grid_t = _cdiv(rows, block_rows)

    # Split the reduction across both TensorCores (v7x megacore) when possible.
    n_split = 2 if (grid_t >= 2 and grid_t % 2 == 0) else 1
    t_per_split = grid_t // n_split

    # Only pad when N is not lane-aligned; aligned inputs reshape for free.
    # The clipped / zero-padded tail of the last row-block is masked in-kernel.
    if N % LANE == 0:
        x = opacities.reshape(R, rows, LANE)
    else:
        # Minimal pad (to the next multiple of 128). Keeping N lane-aligned
        # upstream avoids this extra HBM copy entirely.
        x = jnp.pad(opacities, ((0, 0), (0, rows * LANE - N)))
        x = x.reshape(R, rows, LANE)

    needs_mask = (N % LANE != 0) or (rows % block_rows != 0)

    chunk_rows = min(int(chunk_rows), block_rows)
    chunk_rows = max(gran, (chunk_rows // gran) * gran)

    # mean over N per render, then mean over R, then * weight
    scale = float(weight) / (float(N) * float(R))

    kernel = functools.partial(
        _entropy_kernel, n_valid=N, block_rows=block_rows,
        chunk_rows=chunk_rows, t_per_split=t_per_split,
        total_blocks=grid_t, needs_mask=needs_mask)

    partials = pl.pallas_call(
        kernel,
        out_shape=jax.ShapeDtypeStruct((R * n_split, SUB, LANE), jnp.float32),
        grid=(R, n_split, t_per_split),
        in_specs=[pl.BlockSpec(
            (None, block_rows, LANE),
            lambda r, s, t: (r, s * t_per_split + t, 0))],
        out_specs=pl.BlockSpec(
            (None, SUB, LANE),
            lambda r, s, t: (r * n_split + s, 0, 0)),
        compiler_params=pltpu.CompilerParams(
            dimension_semantics=("parallel", "parallel", "arbitrary"),
            vmem_limit_bytes=32 * 1024 * 1024),
        cost_estimate=pl.CostEstimate(
            flops=7 * R * N,
            transcendentals=2 * R * N,
            bytes_accessed=R * N * itemsize + R * n_split * SUB * LANE * 4),
    )(x)

    # Apply the scale exactly once, outside the kernel.
    return {"gs_opacity_loss": jnp.sum(partials) * scale}


def gs_opacity_loss_ref(opacities, weight=0.001):
    o = opacities.astype(jnp.float32) + 1e-10
    per_render = weight * jnp.mean(-o * jnp.log(o) - (1 - o) * jnp.log(1 - o),
                                   axis=1)
    return jnp.mean(per_render)


if __name__ == "__main__":
    key = jax.random.PRNGKey(0)

    def check(op, **kw):
        got = jax.block_until_ready(gs_opacity_loss(op, **kw)["gs_opacity_loss"])
        ref = gs_opacity_loss_ref(op)
        assert jnp.allclose(got, ref, rtol=1e-5, atol=1e-8), (got, ref, kw)

    # 1) ragged N, single row-block, masked tail only.
    op1 = jax.random.uniform(jax.random.fold_in(key, 0), (3, 1000),
                             dtype=jnp.float32, minval=0.01, maxval=0.99)
    check(op1)

    # 2) lane-aligned N (no pad copy), multi-block reduction split across the
    #    2-way "parallel" core axis, unmasked fast path only.
    op2 = jax.random.uniform(jax.random.fold_in(key, 1), (2, 8192),
                             dtype=jnp.float32, minval=0.01, maxval=0.99)
    check(op2, max_block_rows=16)

    # 3) ragged N with a multi-block sweep: dual masked/unmasked pl.when path.
    op3 = jax.random.uniform(jax.random.fold_in(key, 2), (2, 2000),
                             dtype=jnp.float32, minval=0.01, maxval=0.99)
    check(op3, max_block_rows=8)

    # 4) fused in-kernel chunk loop (fori_loop + static tail chunk).
    op4 = jax.random.uniform(jax.random.fold_in(key, 3), (2, 65 * 128),
                             dtype=jnp.float32, minval=0.01, maxval=0.99)
    check(op4, chunk_rows=16)

    # 5) native-dtype streaming: bf16 input up-cast to f32 inside the kernel.
    op5 = jax.random.uniform(jax.random.fold_in(key, 4), (2, 1000),
                             dtype=jnp.float32, minval=0.01,
                             maxval=0.99).astype(jnp.bfloat16)
    check(op5)

    print("KERNEL_OK")
</pallas_src>

<mosaic_0001>
module attributes {stable_mosaic.version = 11 : i64} {
  func.func @_entropy_kernel(%arg0: i32, %arg1: i32, %arg2: i32, %arg3: memref<1x8x128xf32, #tpu.memory_space<vmem>>, %arg4: memref<1x8x128xf32, #tpu.memory_space<vmem>>) attributes {dimension_semantics = [#tpu.dimension_semantics<parallel>, #tpu.dimension_semantics<parallel>, #tpu.dimension_semantics<arbitrary>], iteration_bounds = array<i64: 3, 1, 1>, scalar_prefetch = 0 : i64, scratch_operands = 0 : i64, tpu.core_type = #tpu.core_type<tc>, window_params = [{transform_indices = @transform_0, window_bounds = array<i64: 1, 8, 128>}, {transform_indices = @transform_1, window_bounds = array<i64: 1, 8, 128>}]} {
    %c0_i32 = arith.constant 0 : i32
    %0 = arith.cmpi eq, %arg2, %c0_i32 : i32
    %1 = arith.extui %0 : i1 to i32
    %c0_i32_0 = arith.constant 0 : i32
    %2 = arith.cmpi ne, %1, %c0_i32_0 : i32
    scf.if %2 {
      %cst_17 = arith.constant 0.000000e+00 : f32
      %46 = vector.broadcast %cst_17 : f32 to vector<8x128xf32>
      %c0_18 = arith.constant 0 : index
      %c0_19 = arith.constant 0 : index
      %c0_20 = arith.constant 0 : index
      %47 = vector.load %arg4[%c0_18, %c0_19, %c0_20] : memref<1x8x128xf32, #tpu.memory_space<vmem>>, vector<1x8x128xf32>
      %48 = vector.shape_cast %47 : vector<1x8x128xf32> to vector<8x128xf32>
      %49 = vector.shape_cast %46 : vector<8x128xf32> to vector<1x8x128xf32>
      tpu.vector_store %arg4[%c0_18, %c0_19, %c0_20], %49 {strides = array<i32>} : memref<1x8x128xf32, #tpu.memory_space<vmem>>, vector<1x8x128xf32>,
    } else {
    }
    %c1_i32 = arith.constant 1 : i32
    %3 = arith.muli %arg1, %c1_i32 : i32
    %4 = arith.addi %3, %arg2 : i32
    %c0 = arith.constant 0 : index
    %c0_1 = arith.constant 0 : index
    %c0_2 = arith.constant 0 : index
    %5 = vector.load %arg4[%c0, %c0_1, %c0_2] : memref<1x8x128xf32, #tpu.memory_space<vmem>>, vector<1x8x128xf32>
    %6 = vector.shape_cast %5 : vector<1x8x128xf32> to vector<8x128xf32>
    %cst = arith.constant 0.000000e+00 : f32
    %7 = vector.broadcast %cst : f32 to vector<8x128xf32>
    %c0_i32_3 = arith.constant 0 : i32
    %c8_i32 = arith.constant 8 : i32
    %8 = arith.muli %c0_i32_3, %c8_i32 : i32
    %9 = tpu.assume_multiple %8, 8 : i32
    %c0_4 = arith.constant 0 : index
    %10 = arith.index_cast %9 : i32 to index
    %c0_5 = arith.constant 0 : index
    %11 = vector.load %arg3[%c0_4, %10, %c0_5] : memref<1x8x128xf32, #tpu.memory_space<vmem>>, vector<1x8x128xf32>
    %12 = vector.shape_cast %11 : vector<1x8x128xf32> to vector<8x128xf32>
    %cst_6 = arith.constant 1.000000e-10 : f32
    %13 = vector.broadcast %cst_6 : f32 to vector<8x128xf32>
    %14 = arith.addf %12, %13 : vector<8x128xf32>
    %cst_7 = arith.constant 0.000000e+00 : f32
    %15 = vector.broadcast %cst_7 : f32 to vector<8x128xf32>
    %16 = arith.subf %15, %14 : vector<8x128xf32>
    %17 = math.log %14 : vector<8x128xf32>
    %18 = arith.mulf %16, %17 : vector<8x128xf32>
    %cst_8 = arith.constant 1.000000e+00 : f32
    %19 = vector.broadcast %cst_8 : f32 to vector<8x128xf32>
    %20 = arith.subf %19, %14 : vector<8x128xf32>
    %cst_9 = arith.constant 1.000000e+00 : f32
    %21 = vector.broadcast %cst_9 : f32 to vector<8x128xf32>
    %22 = arith.subf %21, %14 : vector<8x128xf32>
    %23 = math.log %22 : vector<8x128xf32>
    %24 = arith.mulf %20, %23 : vector<8x128xf32>
    %25 = arith.subf %18, %24 : vector<8x128xf32>
    %26 = tpu.iota {dimensions = array<i32: 0>} : vector<8x128xi32>
    %27 = tpu.iota {dimensions = array<i32: 1>} : vector<8x128xi32>
    %c8_i32_10 = arith.constant 8 : i32
    %28 = arith.muli %4, %c8_i32_10 : i32
    %29 = arith.addi %28, %9 : i32
    %30 = vector.broadcast %29 : i32 to vector<8x128xi32>
    %31 = arith.addi %30, %26 : vector<8x128xi32>
    %c128_i32 = arith.constant 128 : i32
    %32 = vector.broadcast %c128_i32 : i32 to vector<8x128xi32>
    %33 = arith.muli %31, %32 : vector<8x128xi32>
    %34 = arith.addi %33, %27 : vector<8x128xi32>
    %c1000_i32 = arith.constant 1000 : i32
    %35 = vector.broadcast %c1000_i32 : i32 to vector<8x128xi32>
    %36 = arith.cmpi slt, %34, %35 : vector<8x128xi32>
    %cst_11 = arith.constant 0.000000e+00 : f32
    %37 = vector.broadcast %cst_11 : f32 to vector<8x128xf32>
    %38 = arith.select %36, %25, %37 : vector<8x128xi1>, vector<8x128xf32>
    %39 = vector.shape_cast %38 : vector<8x128xf32> to vector<1x8x128xf32>
    %cst_12 = arith.constant dense<0.000000e+00> : vector<8x128xf32>
    %40 = vector.multi_reduction <add>, %39, %cst_12 [0] : vector<1x8x128xf32> to vector<8x128xf32>
    %41 = arith.addf %7, %40 : vector<8x128xf32>
    %c1_i32_13 = arith.constant 1 : i32
    %42 = arith.addf %6, %41 : vector<8x128xf32>
    %c0_14 = arith.constant 0 : index
    %c0_15 = arith.constant 0 : index
    %c0_16 = arith.constant 0 : index
    %43 = vector.load %arg4[%c0_14, %c0_15, %c0_16] : memref<1x8x128xf32, #tpu.memory_space<vmem>>, vector<1x8x128xf32>
    %44 = vector.shape_cast %43 : vector<1x8x128xf32> to vector<8x128xf32>
    %45 = vector.shape_cast %42 : vector<8x128xf32> to vector<1x8x128xf32>
    tpu.vector_store %arg4[%c0_14, %c0_15, %c0_16], %45 {strides = array<i32>} : memref<1x8x128xf32, #tpu.memory_space<vmem>>, vector<1x8x128xf32>,
    return
  }
  func.func @transform_0(%arg0: i32, %arg1: i32, %arg2: i32) -> (i32, i32, i32) {
    %c1_i32 = arith.constant 1 : i32
    %0 = arith.muli %arg1, %c1_i32 : i32
    %1 = arith.addi %0, %arg2 : i32
    %c0_i32 = arith.constant 0 : i32
    %c0_i32_0 = arith.constant 0 : i32
    return %arg0, %1, %c0_i32 : i32, i32, i32
  }
  func.func @transform_1(%arg0: i32, %arg1: i32, %arg2: i32) -> (i32, i32, i32) {
    %c1_i32 = arith.constant 1 : i32
    %0 = arith.muli %arg0, %c1_i32 : i32
    %1 = arith.addi %0, %arg1 : i32
    %c0_i32 = arith.constant 0 : i32
    %c0_i32_0 = arith.constant 0 : i32
    %c0_i32_1 = arith.constant 0 : i32
    return %1, %c0_i32, %c0_i32_0 : i32, i32, i32
  }
}

</mosaic_0001>

<llo_original>
// kernel: tpu_custom_call.1
$region0: #{tpu_custom_call.1}
  #allocation0 [shape = 'u32[]', space=smem, size = 0x4, offset = 0x4, fixed_abs, tag = 'smem constant byte address 0x4 - core index']
  #allocation1 [shape = 'u32[144,128]{1,0:T(1,128)}', space=vmem, size = 0x12000, scoped, tag = 'internal scratch']
  %s0 = inlined_call_operand.hbm [shape: f32[3,8,128], index: 0, kind: input, shape index: {}]
  %s1 = inlined_call_operand.hbm [shape: f32[3,8,128], index: 1, kind: output, shape index: {}]
  %s2 = sld [smem:[#allocation0]]
  $region45: #{tpu_custom_call.1} parent=0
    _
  %s4 = ssub.s32 1, %s2
  %s5 = scalar_select 0, %s4, %s2
  $region1: #{tpu_custom_call.1} parent=0
    #allocation2 [shape = 'u8[8192]{0}', space=vmem, size = 0x2000, scoped, tag = 'input window, operand 0']
    #allocation3 [shape = 's32[2]{0}', space=sflag, size = 0x8, scoped, tag = 'scoped memory for tpu_custom_call.1']
    #allocation4 [shape = 's32[2]{0}', space=sflag, size = 0x8, scoped, tag = 'scoped memory for tpu_custom_call.1']
    #allocation5 [shape = 'u8[8192]{0}', space=vmem, size = 0x2000, scoped, tag = 'output window, operand 0']
    %6 = vsyncpa [#allocation3], 0
    %s7 = scalar_lea.sflag [#allocation3], 1
    %8 = vsyncpa %s7, 0
    %9 = vsyncpa [#allocation4], 0
    %s10 = scalar_lea.sflag [#allocation4], 1
    %11 = vsyncpa %s10, 0
    loop: start=0, step=1, limit=5
    $region2: #{tpu_custom_call.1} parent=1 // loop_pre_header
      _
    $region3: #{tpu_custom_call.1} parent=1 // loop_header
      %s13 = sphi 0, %s17
      %p14 = scmp.ge.s32.totalorder %s13, 5
      %s20 = sphi 0, %s39
      %s21 = sphi 0, %s35
      %s22 = sphi 0, %s31
      %s23 = sphi 0, %s20
      %s24 = sphi 0, %s21
      %s25 = sphi 0, %s22
      %s26 = sphi 0, %s23
      %s27 = sphi 0, %s24
      %s28 = sphi 0, %s25
      %s46 = sphi 0, %s48
      %s49 = sphi 0, %s46
      %s50 = sphi 0, %s49
      %s66 = sphi 0, %s50
      %s74 = sphi 0, %s76
      %s77 = sphi 0, %s74
      %s78 = sphi 0, %s77
      %s94 = sphi 0, %s78
    $region4: #{tpu_custom_call.1} parent=1 // loop_header_branch
      %16 = sbr.rel (%p14) target = $region8
    $region5: #{tpu_custom_call.1} parent=1 // loop_body
      %s18 = ssub.s32 %s13, 1
      %s19 = ssub.s32 %s13, 2
      %s29 = sadd.s32 1, %s22
      %p30 = scmp.ge.s32.totalorder %s29, 1
      %s31 = scalar_select %p30, 0, %s29
      %s32 = sadd.s32 1, %s21
      %s33 = scalar_select %p30, %s32, %s21
      %p34 = scmp.ge.s32.totalorder %s33, 1
      %s35 = scalar_select %p34, 0, %s33
      %s36 = sadd.s32 1, %s20
      %s37 = scalar_select %p34, %s36, %s20
      %p38 = scmp.ge.s32.totalorder %s37, 3
      %s39 = scalar_select %p38, 0, %s37
      %s40 = sadd.s32 %s21, %s22
      %s41 = sadd.s32 %s35, %s31
      %s42 = ssub.s32 %s20, %s39
      %s43 = ssub.s32 %s40, %s41
      %s44 = sor.u32 %s42, %s43
      %p45 = scmp.eq.s32.totalorder %s44, 0
      %s47 = sadd.s32 %s46, 1
      %s48 = scalar_select %p45, %s46, %s47
      %p51 = pneg %p45
      %p52 = scmp.eq.s32.totalorder %s13, 2
      %p53 = por %p51, %p52
      %p54 = scmp.ne.s32.totalorder %s46, %s49
      %p55 = scmp.eq.s32.totalorder %s13, 0
      %p56 = por %p54, %p55
      %p57 = scmp.ne.s32.totalorder %s46, %s49
      %p58 = scmp.eq.s32.totalorder %s18, 2
      %p59 = por %p57, %p58
      %p60 = scmp.ne.s32.totalorder %s49, %s50
      %p61 = scmp.eq.s32.totalorder %s18, 0
      %p62 = por %p60, %p61
      %p63 = scmp.ne.s32.totalorder %s49, %s50
      %p64 = scmp.eq.s32.totalorder %s19, 2
      %p65 = por %p63, %p64
      %p67 = scmp.ne.s32.totalorder %s50, %s66
      %p68 = scmp.eq.s32.totalorder %s19, 0
      %p69 = por %p67, %p68
      %s70 = sadd.s32 %s20, %s21
      %s71 = sadd.s32 %s39, %s35
      %s72 = ssub.s32 %s70, %s71
      %p73 = scmp.eq.s32.totalorder %s72, 0
      %s75 = sadd.s32 %s74, 1
      %s76 = scalar_select %p73, %s74, %s75
      %p79 = pneg %p73
      %p80 = scmp.eq.s32.totalorder %s13, 2
      %p81 = por %p79, %p80
      %p82 = scmp.ne.s32.totalorder %s74, %s77
      %p83 = scmp.eq.s32.totalorder %s13, 0
      %p84 = por %p82, %p83
      %p85 = scmp.ne.s32.totalorder %s74, %s77
      %p86 = scmp.eq.s32.totalorder %s18, 2
      %p87 = por %p85, %p86
      %p88 = scmp.ne.s32.totalorder %s77, %s78
      %p89 = scmp.eq.s32.totalorder %s18, 0
      %p90 = por %p88, %p89
      %p91 = scmp.ne.s32.totalorder %s77, %s78
      %p92 = scmp.eq.s32.totalorder %s19, 2
      %p93 = por %p91, %p92
      %p95 = scmp.ne.s32.totalorder %s78, %s94
      %p96 = scmp.eq.s32.totalorder %s19, 0
      %p97 = por %p95, %p96
      %p98 = scmp.le.s32.totalorder 1, %s13
      %p99 = scmp.lt.s32.totalorder %s13, 4
      %p100 = pnand %p98, %p99
      %p101 = pneg %p100
      // Predicated region
      $region9: #{tpu_custom_call.1} parent=5 // pred_check
        _
      $region10: #{tpu_custom_call.1} parent=5 // pred_check_branch
        %103 = sbr.rel (%p100) target = $region12
      $region11: #{tpu_custom_call.1} parent=5 // pred_region
        %s104 = ssub.s32 %s13, 1
      $region12: #{tpu_custom_call.1} parent=5 // pred_fallthru
        _
      %p105 = scmp.lt.s32.totalorder %s13, 3
      // Predicated region
      $region13: #{tpu_custom_call.1} parent=5 // pred_check
        %p106 = pneg %p105
      $region14: #{tpu_custom_call.1} parent=5 // pred_check_branch
        %108 = sbr.rel (%p106) target = $region16
      $region15: #{tpu_custom_call.1} parent=5 // pred_region
        // Predicated region
        $region17: #{tpu_custom_call.1} parent=15 // pred_check
          %p109 = pneg %p56
        $region18: #{tpu_custom_call.1} parent=15 // pred_check_branch
          %111 = sbr.rel (%p109) target = $region20
        $region19: #{tpu_custom_call.1} parent=15 // pred_region
          %s112 = sand.u32 %s46, 1
          %s113 = scalar_lea.sflag [#allocation3], %s112
          %s114 = sand.u32 %s46, 1
          %s115 = smul.addr %s114, 8
          %s116 = scalar_lea.vmem [#allocation2], %s115
          %s117 = sadd.s32 %s21, %s22
          %s119 = ssub.s32 128, 128
          %120 = vsyncadd %s113, %s119
          %s121 = sadd.s32 %s117, %s20
          %s122 = smul.addr %s121, 128
          %s123 = scalar_lea.hbm %s0, %s122
          %s125 = sshll.u32 %s116, 4
          %s126 = int_to_ptr.vmem [resolvable:$true] %s125
          %128 = dma.hbm_to_vmem [thread:$0]  %s123, 128, %s126, %s113
        $region20: #{tpu_custom_call.1} parent=15 // pred_fallthru
          _
      $region16: #{tpu_custom_call.1} parent=5 // pred_fallthru
        _
      %p129 = scmp.le.s32.totalorder 1, %s13
      %p130 = scmp.lt.s32.totalorder %s13, 4
      %p131 = pnand %p129, %p130
      %p132 = pneg %p131
      // Predicated region
      $region21: #{tpu_custom_call.1} parent=5 // pred_check
        _
      $region22: #{tpu_custom_call.1} parent=5 // pred_check_branch
        %134 = sbr.rel (%p131) target = $region24
      $region23: #{tpu_custom_call.1} parent=5 // pred_region
        %s135 = ssub.s32 %s13, 1
        %s136 = sand.u32 %s49, 1
        %s137 = scalar_lea.sflag [#allocation3], %s136
        %s138 = sand.u32 %s49, 1
        %s139 = smul.addr %s138, 8
        %s140 = scalar_lea.vmem [#allocation2], %s139
        // Predicated region
        $region25: #{tpu_custom_call.1} parent=23 // pred_check
          %p141 = pneg %p62
        $region26: #{tpu_custom_call.1} parent=23 // pred_check_branch
          %143 = sbr.rel (%p141) target = $region28
        $region27: #{tpu_custom_call.1} parent=23 // pred_region
          %144 = dma.done %s137, 128
        $region28: #{tpu_custom_call.1} parent=23 // pred_fallthru
          _
        %s145 = sand.u32 %s49, 1
        %s146 = scalar_lea.sflag [#allocation3], %s145
        %s147 = sand.u32 %s49, 1
        %s148 = smul.addr %s147, 8
        %s149 = scalar_lea.vmem [#allocation2], %s148
        %p150 = pneg %p62
        %p151 = pneg %p59
        %p152 = pneg %p90
        %p153 = pneg %p87
        %s154 = sand.u32 %s77, 1
        %s155 = scalar_lea.sflag [#allocation4], %s154
        %s156 = sand.u32 %s77, 1
        %s157 = smul.addr %s156, 8
        %s158 = scalar_lea.vmem [#allocation5], %s157
        %s159 = sadd.s32 %s24, %s25
        %s160 = sadd.s32 %s23, %s24
        %p161 = scmp.eq.s32.totalorder %s25, 0
        // Predicated region
        $region29: #{tpu_custom_call.1} parent=23 // pred_check
          %p162 = pneg %p161
        $region30: #{tpu_custom_call.1} parent=23 // pred_check_branch
          %164 = sbr.rel (%p162) target = $region32
        $region31: #{tpu_custom_call.1} parent=23 // pred_region
          %165 = vst [vmem:[%s158] sm:$0xff] 0.0
        $region32: #{tpu_custom_call.1} parent=23 // pred_fallthru
          _
        %s166 = sadd.s32 %s24, %s25
        %v167 = vld [vmem:[%s158] sm:$0xff]
        %v168 = vld [vmem:[%s140] sm:$0xff]
        %v169 = vadd.f32 %v168, 1e-10
        %v170 = vsub.f32 0.0, %v169
        %v171 = vlog2.pop %v169
        %v172 = vmul.f32 %v171, 0.6931472
        %v173 = vmul.f32 %v170, %v172
        %v174 = vsub.f32 1.0, %v169
        %v175 = vlog2.pop %v174
        %v176 = vmul.f32 %v175, 0.6931472
        %v177 = vmul.f32 %v174, %v176
        %v178 = vsub.f32 %v173, %v177
        %v179 = vlaneseq
        %v180 = vshrl.u32 %v179, 7
        %v181 = vlaneseq
        %v182 = vand.u32 %v181, 127
        %s183 = smul.u32 %s166, 8
        %s184 = sadd.s32 %s183, 0
        %v185 = vstv %s184
        %v186 = vadd.s32 %v185, %v180
        %v187 = vmul.u32 %v186, 128
        %v188 = vadd.s32 %v187, %v182
        %vm189 = vcmp.lt.s32.totalorder %v188, 1000
        %v190 = vsel %vm189, %v178, 0.0
        %v191 = vadd.f32 %v190, 0.0
        %v192 = vadd.f32 %v191, 0.0
        %v193 = vadd.f32 %v167, %v192
        %194 = vst [vmem:[%s158] sm:$0xff] %v193
        %s195 = sand.u32 %s77, 1
        %s196 = scalar_lea.sflag [#allocation4], %s195
        %s197 = sand.u32 %s77, 1
        %s198 = smul.addr %s197, 8
        %s199 = scalar_lea.vmem [#allocation5], %s198
        // Predicated region
        $region33: #{tpu_custom_call.1} parent=23 // pred_check
          %p200 = pneg %p87
        $region34: #{tpu_custom_call.1} parent=23 // pred_check_branch
          %202 = sbr.rel (%p200) target = $region36
        $region35: #{tpu_custom_call.1} parent=23 // pred_region
          %s203 = sadd.s32 %s23, %s24
          %s205 = ssub.s32 128, 128
          %206 = vsyncadd %s196, %s205
          %s207 = smul.addr %s203, 128
          %s208 = scalar_lea.hbm %s1, %s207
          %s210 = sshll.u32 %s199, 4
          %s211 = int_to_ptr.vmem [resolvable:$true] %s210
          %213 = dma.vmem_to_hbm [thread:$0]  %s211, 128, %s208, %s196
        $region36: #{tpu_custom_call.1} parent=23 // pred_fallthru
          _
      $region24: #{tpu_custom_call.1} parent=5 // pred_fallthru
        _
      %p214 = scmp.le.s32.totalorder 2, %s13
      // Predicated region
      $region37: #{tpu_custom_call.1} parent=5 // pred_check
        %p215 = pneg %p214
      $region38: #{tpu_custom_call.1} parent=5 // pred_check_branch
        %217 = sbr.rel (%p215) target = $region40
      $region39: #{tpu_custom_call.1} parent=5 // pred_region
        %s218 = ssub.s32 %s13, 2
        // Predicated region
        $region41: #{tpu_custom_call.1} parent=39 // pred_check
          %p219 = pneg %p93
        $region42: #{tpu_custom_call.1} parent=39 // pred_check_branch
          %221 = sbr.rel (%p219) target = $region44
        $region43: #{tpu_custom_call.1} parent=39 // pred_region
          %s222 = sand.u32 %s78, 1
          %s223 = scalar_lea.sflag [#allocation4], %s222
          %s224 = sand.u32 %s78, 1
          %s225 = smul.addr %s224, 8
          %s226 = scalar_lea.vmem [#allocation5], %s225
          %227 = dma.done %s223, 128
        $region44: #{tpu_custom_call.1} parent=39 // pred_fallthru
          _
      $region40: #{tpu_custom_call.1} parent=5 // pred_fallthru
        _
    $region6: #{tpu_custom_call.1} parent=1 // loop_footer
      %s17 = sadd.s32 1, %s13
    $region7: #{tpu_custom_call.1} parent=1 // loop_footer_branch
      %12 = sbr.rel target = $region3
    $region8: #{tpu_custom_call.1} parent=1 // loop_exit
      _
    %228 = vsyncpa [#allocation3], 1
    %s229 = scalar_lea.sflag [#allocation3], 1
    %230 = vsyncpa %s229, 1
    %231 = vsyncpa [#allocation4], 1
    %s232 = scalar_lea.sflag [#allocation4], 1
    %233 = vsyncpa %s232, 1

</llo_original>
